<compile_context>
chip_gen: v5e
topology: v5e:2x2
jax: 0.10.0
libtpu: 0.0.40
codegen_flags: <defaults>
</compile_context>

<pallas_src>
import functools

import jax
import jax.numpy as jnp
from jax import lax
from jax.experimental import pallas as pl
from jax.experimental.pallas import tpu as pltpu


def _conv_se_kernel(xp_ref, prm_ref, out_ref, *, cin, cout, hidden, kernel,
                    stride, l_in, l_out, eps):
    xp = xp_ref[...]                       # (B, Cin, Lpad)  zero-padded input
    prm = prm_ref[...]                     # (R, K*Cin + Cin + Hid + 2) packed params

    b = xp.shape[0]
    ck = cin * kernel
    c1, c2, c3 = ck, ck + cin, ck + cin + hidden

    w2d   = prm[:cout,   0:c1]             # (Cout, K*Cin)  tap-major conv weight
    w1    = prm[:hidden, c1:c2]            # (Hid, Cin)     fc1 (no bias)
    w2    = prm[:cout,   c2:c3]            # (Cout, Hid)    fc2 (no bias)
    gamma = prm[:cout,   c3:c3 + 1]        # (Cout, 1)
    beta  = prm[:cout,   c3 + 1:c3 + 2]    # (Cout, 1)

    # ---- SE branch (VPU broadcast-mul + lane reduce + EUP sigmoid).
    #      Padding columns are zero, so summing over Lpad equals summing over
    #      the original L; denominators are compile-time constants.
    pooled = jnp.sum(xp, axis=-1) * (1.0 / l_in)                          # (B, Cin)
    h = jnp.maximum(
        jnp.sum(pooled[:, None, :] * w1[None, :, :], axis=-1), 0.0)       # (B, Hid)
    se = jax.nn.sigmoid(
        jnp.sum(h[:, None, :] * w2[None, :, :], axis=-1, keepdims=True))  # (B, Cout, 1)

    # ---- Conv1d: K static-shift accumulating batched matmuls on the MXU.
    #      Conv bias is dropped -- under training-mode BN it cancels exactly.
    #      (For production sizes cast wk/tap to bf16 here, keep f32 accum.)
    w_b = jnp.broadcast_to(w2d[None, :, :], (b, cout, ck))                # hoisted once
    span = stride * (l_out - 1) + 1
    conv = jnp.zeros((b, cout, l_out), jnp.float32)
    for k in range(kernel):                                               # K static & tiny
        tap = lax.slice(xp, (0, 0, k), (b, cin, k + span), (1, 1, stride))  # (B,Cin,Lout)
        wk = w_b[:, :, k * cin:(k + 1) * cin]                               # (B,Cout,Cin)
        conv = conv + jnp.einsum('boc,bcl->bol', wk, tap,
                                 preferred_element_type=jnp.float32)        # (B,Cout,Lout)

    # ---- BatchNorm1d (fresh module => training mode, biased batch stats per
    #      channel over the (B, Lout) axes); gamma folded into the rsqrt scale.
    inv_n = 1.0 / (b * l_out)
    mu = jnp.sum(jnp.sum(conv, axis=2, keepdims=True),
                 axis=0, keepdims=True) * inv_n                           # (1, Cout, 1)
    xc = conv - mu
    var = jnp.sum(jnp.sum(xc * xc, axis=2, keepdims=True),
                  axis=0, keepdims=True) * inv_n                          # (1, Cout, 1)
    scale = gamma[None, :, :] * lax.rsqrt(var + eps)                      # (1, Cout, 1)
    y = jnp.maximum(xc * scale + beta[None, :, :], 0.0)                   # BN + ReLU

    # ---- SE gating: plain broadcast; output already in (B, Cout, Lout).
    out_ref[...] = y * se


def conv_se_forward(x, params, *, kernel, stride, padding, eps=1e-5):
    b, cin, l_in = x.shape
    cout = params['conv_w'].shape[0]
    hidden = params['fc1_w'].shape[0]
    l_out = (l_in + 2 * padding - kernel) // stride + 1

    # ---- wrapper-side layout plumbing (cheap; no Kx im2col expansion) ------
    x_pad = jnp.pad(x.astype(jnp.float32), ((0, 0), (0, 0), (padding, padding)))

    # pack ALL tiny parameters into one array -> a single prologue DMA
    w_flat = jnp.transpose(params['conv_w'], (0, 2, 1)).reshape(cout, kernel * cin)
    bn2 = jnp.stack([params['bn_w'], params['bn_b']], axis=1)             # (Cout, 2)
    rows = max(cout, hidden)

    def _pad_rows(a):
        a = a.astype(jnp.float32)
        return jnp.pad(a, ((0, rows - a.shape[0]), (0, 0)))

    packed = jnp.concatenate(
        [_pad_rows(w_flat), _pad_rows(params['fc1_w']),
         _pad_rows(params['fc2_w']), _pad_rows(bn2)], axis=1)

    kern = functools.partial(
        _conv_se_kernel, cin=cin, cout=cout, hidden=hidden, kernel=kernel,
        stride=stride, l_in=l_in, l_out=l_out, eps=eps)

    # explicit VMEM budget for the gridless all-resident design
    est_bytes = 4 * (x_pad.size + packed.size + b * cout * l_out)
    vmem_bytes = int(min(max(8 * est_bytes + (1 << 20), 4 << 20), 32 << 20))

    vmem = pl.BlockSpec(memory_space=pltpu.MemorySpace.VMEM)
    return pl.pallas_call(
        kern,
        out_shape=jax.ShapeDtypeStruct((b, cout, l_out), jnp.float32),
        in_specs=[vmem, vmem],
        out_specs=vmem,
        compiler_params=pltpu.CompilerParams(vmem_limit_bytes=vmem_bytes),
    )(x_pad, packed)


def conv_se_reference(x, params, *, kernel, stride, padding, eps=1e-5):
    """Pure-JAX reference (mirrors the PyTorch forward) for verification."""
    pooled = jnp.mean(x, axis=-1)
    h = jnp.maximum(pooled @ params['fc1_w'].T, 0.0)
    se = jax.nn.sigmoid(h @ params['fc2_w'].T)
    conv = lax.conv_general_dilated(
        x, params['conv_w'], (stride,), [(padding, padding)],
        dimension_numbers=('NCH', 'OIH', 'NCH'))
    conv = conv + params['conv_b'][None, :, None]
    mu = jnp.mean(conv, axis=(0, 2), keepdims=True)
    var = jnp.mean((conv - mu) ** 2, axis=(0, 2), keepdims=True)
    y = (conv - mu) / jnp.sqrt(var + eps)
    y = y * params['bn_w'][None, :, None] + params['bn_b'][None, :, None]
    y = jnp.maximum(y, 0.0)
    return y * se[:, :, None]


if __name__ == "__main__":
    # para = {'inchan': 4, 'outchan': 8, 'kernel': 3, 'stride': 1,
    #         'padding': 1, 'ratio': 2}
    b, cin, L = 2, 4, 16
    cout, kernel, stride, padding, ratio = 8, 3, 1, 1, 2
    hidden = cout // ratio

    key = jax.random.PRNGKey(0)
    ks = jax.random.split(key, 5)
    params = dict(
        conv_w=jax.random.normal(ks[0], (cout, cin, kernel), jnp.float32) * 0.1,
        conv_b=jax.random.normal(ks[1], (cout,), jnp.float32) * 0.1,
        fc1_w=jax.random.normal(ks[2], (hidden, cin), jnp.float32) * 0.1,
        fc2_w=jax.random.normal(ks[3], (cout, hidden), jnp.float32) * 0.1,
        bn_w=jnp.full((cout,), 0.5, jnp.float32),   # nn.init.constant_(bn.weight, 0.5)
        bn_b=jnp.zeros((cout,), jnp.float32),       # nn.init.zeros_(bn.bias)
    )
    x = jax.random.normal(ks[4], (b, cin, L), jnp.float32)

    out = conv_se_forward(x, params, kernel=kernel, stride=stride, padding=padding)
    out = jax.block_until_ready(out)

    ref = conv_se_reference(x, params, kernel=kernel, stride=stride, padding=padding)
    assert out.shape == (b, cout, (L + 2 * padding - kernel) // stride + 1)
    assert jnp.allclose(out, ref, atol=1e-4, rtol=1e-4), "mismatch vs reference"

    print("KERNEL_OK")
</pallas_src>

<mosaic_0001>
module attributes {stable_mosaic.version = 11 : i64} {
  func.func @_conv_se_kernel(%arg0: memref<2x4x18xf32, #tpu.memory_space<vmem>>, %arg1: memref<8x22xf32, #tpu.memory_space<vmem>>, %arg2: memref<2x8x16xf32, #tpu.memory_space<vmem>>) attributes {dimension_semantics = [], scalar_prefetch = 0 : i64, scratch_operands = 0 : i64, tpu.core_type = #tpu.core_type<tc>} {
    %c0 = arith.constant 0 : index
    %c0_0 = arith.constant 0 : index
    %c0_1 = arith.constant 0 : index
    %0 = vector.load %arg0[%c0, %c0_0, %c0_1] : memref<2x4x18xf32, #tpu.memory_space<vmem>>, vector<2x4x18xf32>
    %c0_2 = arith.constant 0 : index
    %c0_3 = arith.constant 0 : index
    %1 = vector.load %arg1[%c0_2, %c0_3] : memref<8x22xf32, #tpu.memory_space<vmem>>, vector<8x22xf32>
    %2 = vector.extract_strided_slice %1 {offsets = [0, 0], sizes = [8, 12], strides = [1, 1]} : vector<8x22xf32> to vector<8x12xf32>
    %3 = vector.extract_strided_slice %1 {offsets = [0, 12], sizes = [4, 4], strides = [1, 1]} : vector<8x22xf32> to vector<4x4xf32>
    %4 = vector.extract_strided_slice %1 {offsets = [0, 16], sizes = [8, 4], strides = [1, 1]} : vector<8x22xf32> to vector<8x4xf32>
    %5 = vector.extract_strided_slice %1 {offsets = [0, 20], sizes = [8, 1], strides = [1, 1]} : vector<8x22xf32> to vector<8x1xf32>
    %6 = vector.extract_strided_slice %1 {offsets = [0, 21], sizes = [8, 1], strides = [1, 1]} : vector<8x22xf32> to vector<8x1xf32>
    %cst = arith.constant dense<0.000000e+00> : vector<2x4xf32>
    %7 = vector.multi_reduction <add>, %0, %cst [2] : vector<2x4x18xf32> to vector<2x4xf32>
    %cst_4 = arith.constant 6.250000e-02 : f32
    %8 = vector.broadcast %cst_4 : f32 to vector<2x4xf32>
    %9 = arith.mulf %7, %8 : vector<2x4xf32>
    %10 = vector.shape_cast %9 : vector<2x4xf32> to vector<2x1x4xf32>
    %11 = vector.shape_cast %3 : vector<4x4xf32> to vector<1x4x4xf32>
    %12 = vector.broadcast %10 : vector<2x1x4xf32> to vector<2x4x4xf32>
    %13 = vector.broadcast %11 : vector<1x4x4xf32> to vector<2x4x4xf32>
    %14 = arith.mulf %12, %13 : vector<2x4x4xf32>
    %cst_5 = arith.constant dense<0.000000e+00> : vector<2x4xf32>
    %15 = vector.multi_reduction <add>, %14, %cst_5 [2] : vector<2x4x4xf32> to vector<2x4xf32>
    %cst_6 = arith.constant 0.000000e+00 : f32
    %16 = vector.broadcast %cst_6 : f32 to vector<2x4xf32>
    %17 = arith.maximumf %15, %16 : vector<2x4xf32>
    %18 = vector.shape_cast %17 : vector<2x4xf32> to vector<2x1x4xf32>
    %19 = vector.shape_cast %4 : vector<8x4xf32> to vector<1x8x4xf32>
    %20 = vector.broadcast %18 : vector<2x1x4xf32> to vector<2x8x4xf32>
    %21 = vector.broadcast %19 : vector<1x8x4xf32> to vector<2x8x4xf32>
    %22 = arith.mulf %20, %21 : vector<2x8x4xf32>
    %cst_7 = arith.constant dense<0.000000e+00> : vector<2x8xf32>
    %23 = vector.multi_reduction <add>, %22, %cst_7 [2] : vector<2x8x4xf32> to vector<2x8xf32>
    %24 = vector.shape_cast %23 : vector<2x8xf32> to vector<2x8x1xf32>
    %25 = arith.negf %24 : vector<2x8x1xf32>
    %26 = math.exp %25 : vector<2x8x1xf32>
    %cst_8 = arith.constant 1.000000e+00 : f32
    %27 = vector.broadcast %cst_8 : f32 to vector<2x8x1xf32>
    %28 = arith.addf %27, %26 : vector<2x8x1xf32>
    %29 = arith.divf %27, %28 : vector<2x8x1xf32>
    %30 = vector.shape_cast %2 : vector<8x12xf32> to vector<1x8x12xf32>
    %31 = vector.shape_cast %30 : vector<1x8x12xf32> to vector<1x8x12xf32>
    %32 = vector.broadcast %31 : vector<1x8x12xf32> to vector<2x8x12xf32>
    %cst_9 = arith.constant 0.000000e+00 : f32
    %33 = vector.broadcast %cst_9 : f32 to vector<2x8x16xf32>
    %34 = vector.extract_strided_slice %0 {offsets = [0, 0, 0], sizes = [2, 4, 16], strides = [1, 1, 1]} : vector<2x4x18xf32> to vector<2x4x16xf32>
    %35 = vector.extract_strided_slice %32 {offsets = [0, 0, 0], sizes = [2, 8, 4], strides = [1, 1, 1]} : vector<2x8x12xf32> to vector<2x8x4xf32>
    "tpu.trace_start"() <{level = 10 : i32, message = "boc,bcl->bol"}> : () -> ()
    %cst_10 = arith.constant dense<0.000000e+00> : vector<2x8x16xf32>
    %36 = tpu.matmul %35, %34, %cst_10 {dimension_numbers = #tpu.dot_dimension_numbers<[2], [1], [1], [2], [0, 0, 0, 1, 1, 2], [0], [0]>} : vector<2x8x4xf32>, vector<2x4x16xf32>, vector<2x8x16xf32> -> vector<2x8x16xf32>
    "tpu.trace_stop"() : () -> ()
    %37 = arith.addf %33, %36 : vector<2x8x16xf32>
    %38 = vector.extract_strided_slice %0 {offsets = [0, 0, 1], sizes = [2, 4, 16], strides = [1, 1, 1]} : vector<2x4x18xf32> to vector<2x4x16xf32>
    %39 = vector.extract_strided_slice %32 {offsets = [0, 0, 4], sizes = [2, 8, 4], strides = [1, 1, 1]} : vector<2x8x12xf32> to vector<2x8x4xf32>
    "tpu.trace_start"() <{level = 10 : i32, message = "boc,bcl->bol"}> : () -> ()
    %cst_11 = arith.constant dense<0.000000e+00> : vector<2x8x16xf32>
    %40 = tpu.matmul %39, %38, %cst_11 {dimension_numbers = #tpu.dot_dimension_numbers<[2], [1], [1], [2], [0, 0, 0, 1, 1, 2], [0], [0]>} : vector<2x8x4xf32>, vector<2x4x16xf32>, vector<2x8x16xf32> -> vector<2x8x16xf32>
    "tpu.trace_stop"() : () -> ()
    %41 = arith.addf %37, %40 : vector<2x8x16xf32>
    %42 = vector.extract_strided_slice %0 {offsets = [0, 0, 2], sizes = [2, 4, 16], strides = [1, 1, 1]} : vector<2x4x18xf32> to vector<2x4x16xf32>
    %43 = vector.extract_strided_slice %32 {offsets = [0, 0, 8], sizes = [2, 8, 4], strides = [1, 1, 1]} : vector<2x8x12xf32> to vector<2x8x4xf32>
    "tpu.trace_start"() <{level = 10 : i32, message = "boc,bcl->bol"}> : () -> ()
    %cst_12 = arith.constant dense<0.000000e+00> : vector<2x8x16xf32>
    %44 = tpu.matmul %43, %42, %cst_12 {dimension_numbers = #tpu.dot_dimension_numbers<[2], [1], [1], [2], [0, 0, 0, 1, 1, 2], [0], [0]>} : vector<2x8x4xf32>, vector<2x4x16xf32>, vector<2x8x16xf32> -> vector<2x8x16xf32>
    "tpu.trace_stop"() : () -> ()
    %45 = arith.addf %41, %44 : vector<2x8x16xf32>
    %cst_13 = arith.constant dense<0.000000e+00> : vector<2x8xf32>
    %46 = vector.multi_reduction <add>, %45, %cst_13 [2] : vector<2x8x16xf32> to vector<2x8xf32>
    %47 = vector.shape_cast %46 : vector<2x8xf32> to vector<2x8x1xf32>
    %cst_14 = arith.constant dense<0.000000e+00> : vector<8x1xf32>
    %48 = vector.multi_reduction <add>, %47, %cst_14 [0] : vector<2x8x1xf32> to vector<8x1xf32>
    %49 = vector.shape_cast %48 : vector<8x1xf32> to vector<1x8x1xf32>
    %cst_15 = arith.constant 3.125000e-02 : f32
    %50 = vector.broadcast %cst_15 : f32 to vector<1x8x1xf32>
    %51 = arith.mulf %49, %50 : vector<1x8x1xf32>
    %52 = vector.broadcast %51 : vector<1x8x1xf32> to vector<2x8x16xf32>
    %53 = arith.subf %45, %52 : vector<2x8x16xf32>
    %54 = arith.mulf %53, %53 : vector<2x8x16xf32>
    %cst_16 = arith.constant dense<0.000000e+00> : vector<2x8xf32>
    %55 = vector.multi_reduction <add>, %54, %cst_16 [2] : vector<2x8x16xf32> to vector<2x8xf32>
    %56 = vector.shape_cast %55 : vector<2x8xf32> to vector<2x8x1xf32>
    %cst_17 = arith.constant dense<0.000000e+00> : vector<8x1xf32>
    %57 = vector.multi_reduction <add>, %56, %cst_17 [0] : vector<2x8x1xf32> to vector<8x1xf32>
    %58 = vector.shape_cast %57 : vector<8x1xf32> to vector<1x8x1xf32>
    %cst_18 = arith.constant 3.125000e-02 : f32
    %59 = vector.broadcast %cst_18 : f32 to vector<1x8x1xf32>
    %60 = arith.mulf %58, %59 : vector<1x8x1xf32>
    %61 = vector.shape_cast %5 : vector<8x1xf32> to vector<1x8x1xf32>
    %cst_19 = arith.constant 9.99999974E-6 : f32
    %62 = vector.broadcast %cst_19 : f32 to vector<1x8x1xf32>
    %63 = arith.addf %60, %62 : vector<1x8x1xf32>
    %64 = math.rsqrt %63 : vector<1x8x1xf32>
    %65 = arith.mulf %61, %64 : vector<1x8x1xf32>
    %66 = vector.broadcast %65 : vector<1x8x1xf32> to vector<2x8x16xf32>
    %67 = arith.mulf %53, %66 : vector<2x8x16xf32>
    %68 = vector.shape_cast %6 : vector<8x1xf32> to vector<1x8x1xf32>
    %69 = vector.broadcast %68 : vector<1x8x1xf32> to vector<2x8x16xf32>
    %70 = arith.addf %67, %69 : vector<2x8x16xf32>
    %cst_20 = arith.constant 0.000000e+00 : f32
    %71 = vector.broadcast %cst_20 : f32 to vector<2x8x16xf32>
    %72 = arith.maximumf %70, %71 : vector<2x8x16xf32>
    %73 = vector.broadcast %29 : vector<2x8x1xf32> to vector<2x8x16xf32>
    %74 = arith.mulf %72, %73 : vector<2x8x16xf32>
    %c0_21 = arith.constant 0 : index
    %c0_22 = arith.constant 0 : index
    %c0_23 = arith.constant 0 : index
    %75 = vector.load %arg2[%c0_21, %c0_22, %c0_23] : memref<2x8x16xf32, #tpu.memory_space<vmem>>, vector<2x8x16xf32>
    tpu.vector_store %arg2[%c0_21, %c0_22, %c0_23], %74 {strides = array<i32>} : memref<2x8x16xf32, #tpu.memory_space<vmem>>, vector<2x8x16xf32>,
    return
  }
}

</mosaic_0001>

<llo_original>
// kernel: tpu_custom_call.1
$region0: #{tpu_custom_call.1}
  #allocation0 [shape = 'u32[]', space=smem, size = 0x4, offset = 0x4, fixed_abs, tag = 'smem constant byte address 0x4 - core index']
  #allocation1 [shape = 'u32[72,128]{1,0:T(1,128)}', space=vmem, size = 0x9000, scoped, tag = 'internal scratch']
  %s0 = inlined_call_operand.hbm [shape: f32[2,4,18], index: 0, kind: input, shape index: {}]
  %s1 = inlined_call_operand.hbm [shape: f32[8,22], index: 1, kind: input, shape index: {}]
  %s2 = inlined_call_operand.hbm [shape: f32[2,8,16], index: 2, kind: output, shape index: {}]
  %s3 = sld [smem:[#allocation0]]
  $region26: #{tpu_custom_call.1} parent=0
    _
  %s5 = ssub.s32 1, %s3
  %s6 = scalar_select 0, %s5, %s3
  $region1: #{tpu_custom_call.1} parent=0
    #allocation2 [shape = 'u8[4096]{0}', space=vmem, size = 0x1000, scoped, tag = 'input window, operand 0, single buffered']
    #allocation3 [shape = 's32[1]{0}', space=sflag, size = 0x4, scoped, tag = 'scoped memory for tpu_custom_call.1']
    #allocation4 [shape = 's32[1]{0}', space=sflag, size = 0x4, scoped, tag = 'scoped memory for tpu_custom_call.1']
    #allocation5 [shape = 'u8[4096]{0}', space=vmem, size = 0x1000, scoped, tag = 'input window, operand 1, single buffered']
    #allocation6 [shape = 's32[1]{0}', space=sflag, size = 0x4, scoped, tag = 'scoped memory for tpu_custom_call.1']
    #allocation7 [shape = 'u8[8192]{0}', space=vmem, size = 0x2000, scoped, tag = 'output window, operand 0, single buffered']
    %7 = vsyncpa [#allocation3], 0
    %8 = vsyncpa [#allocation6], 0
    %9 = vsyncpa [#allocation4], 0
    // Predicated region
    $region2: #{tpu_custom_call.1} parent=1 // pred_check
      _
    $region3: #{tpu_custom_call.1} parent=1 // pred_check_branch
      %11 = sbr.rel (0) target = $region5
    $region4: #{tpu_custom_call.1} parent=1 // pred_region
      %13 = vsyncadd [#allocation3], 0
      %s14 = sshll.u32 %s0, 4
      %s15 = int_to_ptr.hbm [resolvable:$true] %s14
      %s16 = sshll.u32 [#allocation2], 4
      %s17 = int_to_ptr.vmem [resolvable:$true] %s16
      %22 = dma.hbm_to_vmem [thread:$0]  %s15, 128, %s17, [#allocation3], 64, 64, 4
    $region5: #{tpu_custom_call.1} parent=1 // pred_fallthru
      _
    // Predicated region
    $region6: #{tpu_custom_call.1} parent=1 // pred_check
      _
    $region7: #{tpu_custom_call.1} parent=1 // pred_check_branch
      %24 = sbr.rel (0) target = $region9
    $region8: #{tpu_custom_call.1} parent=1 // pred_region
      %26 = vsyncadd [#allocation6], 0
      %s28 = sshll.u32 %s1, 4
      %s29 = int_to_ptr.hbm [resolvable:$true] %s28
      %s30 = sshll.u32 [#allocation5], 4
      %s31 = int_to_ptr.vmem [resolvable:$true] %s30
      %33 = dma.hbm_to_vmem [thread:$0]  %s29, 128, %s31, [#allocation6]
    $region9: #{tpu_custom_call.1} parent=1 // pred_fallthru
      _
    // Predicated region
    $region10: #{tpu_custom_call.1} parent=1 // pred_check
      _
    $region11: #{tpu_custom_call.1} parent=1 // pred_check_branch
      %35 = sbr.rel (0) target = $region13
    $region12: #{tpu_custom_call.1} parent=1 // pred_region
      %37 = dma.done [#allocation3], 128
    $region13: #{tpu_custom_call.1} parent=1 // pred_fallthru
      _
    // Predicated region
    $region14: #{tpu_custom_call.1} parent=1 // pred_check
      _
    $region15: #{tpu_custom_call.1} parent=1 // pred_check_branch
      %39 = sbr.rel (0) target = $region17
    $region16: #{tpu_custom_call.1} parent=1 // pred_region
      %41 = dma.done [#allocation6], 128
    $region17: #{tpu_custom_call.1} parent=1 // pred_fallthru
      _
    %v42 = vld [vmem:[#allocation2] sm:$0xf]
    %v43 = vld [vmem:[#allocation2 + $0x4] sm:$0xf]
    %v44 = vld [vmem:[#allocation5] sm:$0xff]
    %vm45 = vcmask 142336
    %v46 = vsel %vm45, %v42, 0.0
    %47 = vadd.xlane.f32.xlu0 %v46
    %v48 = vpop.xlane.xlu0 %47
    %v49 = vsel %vm45, %v43, 0.0
    %50 = vadd.xlane.f32.xlu0 %v49
    %v51 = vpop.xlane.xlu0 %50
    %v52 = vmul.f32 %v48, 0.0625
    %v53 = vmul.f32 %v51, 0.0625
    %v55 = vperm.slane %v44, 0
    %v56 = vlaneseq
    %v57 = vshrl.u32 %v56, 7
    %v58 = vadd.s32 %v57, 12
    %59 = vset.pattern.permute.xlu0 %v58
    %60 = vperm.xlu0 %59, %v55
    %v61 = vpop.permute.xlu0 %60
    %v62 = vperm.slane %v44, 1
    %v63 = vlaneseq
    %v64 = vshrl.u32 %v63, 7
    %v65 = vadd.s32 %v64, 12
    %66 = vset.pattern.permute.xlu0 %v65
    %67 = vperm.xlu0 %66, %v62
    %v68 = vpop.permute.xlu0 %67
    %v69 = vperm.slane %v44, 2
    %v70 = vlaneseq
    %v71 = vshrl.u32 %v70, 7
    %v72 = vadd.s32 %v71, 12
    %73 = vset.pattern.permute.xlu0 %v72
    %74 = vperm.xlu0 %73, %v69
    %v75 = vpop.permute.xlu0 %74
    %v76 = vperm.slane %v44, 3
    %v77 = vlaneseq
    %v78 = vshrl.u32 %v77, 7
    %v79 = vadd.s32 %v78, 12
    %80 = vset.pattern.permute.xlu0 %v79
    %81 = vperm.xlu0 %80, %v76
    %v82 = vpop.permute.xlu0 %81
    %v87 = vmul.f32 %v52, %v61
    %v88 = vmul.f32 %v52, %v68
    %v89 = vmul.f32 %v52, %v75
    %v90 = vmul.f32 %v52, %v82
    %v91 = vmul.f32 %v53, %v61
    %v92 = vmul.f32 %v53, %v68
    %v93 = vmul.f32 %v53, %v75
    %v94 = vmul.f32 %v53, %v82
    %103 = vset.pattern.permute.xlu0 0
    %104 = vperm.xlu0 %103, %v87
    %v105 = vpop.permute.xlu0 %104
    %106 = vset.pattern.permute.xlu0 0
    %107 = vperm.xlu0 %106, %v88
    %v108 = vpop.permute.xlu0 %107
    %109 = vset.pattern.permute.xlu0 0
    %110 = vperm.xlu0 %109, %v89
    %v111 = vpop.permute.xlu0 %110
    %112 = vset.pattern.permute.xlu0 0
    %113 = vperm.xlu0 %112, %v90
    %v114 = vpop.permute.xlu0 %113
    %115 = vset.pattern.permute.xlu0 0
    %116 = vperm.xlu0 %115, %v91
    %v117 = vpop.permute.xlu0 %116
    %118 = vset.pattern.permute.xlu0 0
    %119 = vperm.xlu0 %118, %v92
    %v120 = vpop.permute.xlu0 %119
    %121 = vset.pattern.permute.xlu0 0
    %122 = vperm.xlu0 %121, %v93
    %v123 = vpop.permute.xlu0 %122
    %124 = vset.pattern.permute.xlu0 0
    %125 = vperm.xlu0 %124, %v94
    %v126 = vpop.permute.xlu0 %125
    %v127 = vlaneseq
    %v128 = vand.u32 %v127, 127
    %v129 = vperm.slane %v105, %v128
    %v130 = vperm.slane %v108, %v128
    %v131 = vperm.slane %v111, %v128
    %v132 = vperm.slane %v114, %v128
    %v133 = vperm.slane %v117, %v128
    %v134 = vperm.slane %v120, %v128
    %v135 = vperm.slane %v123, %v128
    %v136 = vperm.slane %v126, %v128
    %vm137 = vcmask 1041409
    %v138 = vsel %vm137, %v130, %v129
    %vm139 = vcmask 1042434
    %v140 = vsel %vm139, %v131, %v138
    %vm141 = vcmask 1043459
    %v142 = vsel %vm141, %v132, %v140
    %v143 = vsel %vm137, %v134, %v133
    %v144 = vsel %vm139, %v135, %v143
    %v145 = vsel %vm141, %v136, %v144
    %vm148 = vcmask 27648
    %v149 = vsel %vm148, %v142, 0.0
    %150 = vadd.xlane.f32.xlu0 %v149
    %v151 = vpop.xlane.xlu0 %150
    %v152 = vsel %vm148, %v145, 0.0
    %153 = vadd.xlane.f32.xlu0 %v152
    %v154 = vpop.xlane.xlu0 %153
    %v155 = vmax.f32 %v151, 0.0
    %v156 = vmax.f32 %v154, 0.0
    %v157 = vlaneseq
    %v158 = vshrl.u32 %v157, 7
    %v159 = vadd.s32 %v158, 16
    %160 = vset.pattern.permute.xlu0 %v159
    %161 = vperm.xlu0 %160, %v55
    %v162 = vpop.permute.xlu0 %161
    %v163 = vlaneseq
    %v164 = vshrl.u32 %v163, 7
    %v165 = vadd.s32 %v164, 16
    %166 = vset.pattern.permute.xlu0 %v165
    %167 = vperm.xlu0 %166, %v62
    %v168 = vpop.permute.xlu0 %167
    %v169 = vlaneseq
    %v170 = vshrl.u32 %v169, 7
    %v171 = vadd.s32 %v170, 16
    %172 = vset.pattern.permute.xlu0 %v171
    %173 = vperm.xlu0 %172, %v69
    %v174 = vpop.permute.xlu0 %173
    %v175 = vlaneseq
    %v176 = vshrl.u32 %v175, 7
    %v177 = vadd.s32 %v176, 16
    %178 = vset.pattern.permute.xlu0 %v177
    %179 = vperm.xlu0 %178, %v76
    %v180 = vpop.permute.xlu0 %179
    %v181 = vperm.slane %v44, 4
    %v182 = vlaneseq
    %v183 = vshrl.u32 %v182, 7
    %v184 = vadd.s32 %v183, 16
    %185 = vset.pattern.permute.xlu0 %v184
    %186 = vperm.xlu0 %185, %v181
    %v187 = vpop.permute.xlu0 %186
    %v188 = vperm.slane %v44, 5
    %v189 = vlaneseq
    %v190 = vshrl.u32 %v189, 7
    %v191 = vadd.s32 %v190, 16
    %192 = vset.pattern.permute.xlu0 %v191
    %193 = vperm.xlu0 %192, %v188
    %v194 = vpop.permute.xlu0 %193
    %v195 = vperm.slane %v44, 6
    %v196 = vlaneseq
    %v197 = vshrl.u32 %v196, 7
    %v198 = vadd.s32 %v197, 16
    %199 = vset.pattern.permute.xlu0 %v198
    %200 = vperm.xlu0 %199, %v195
    %v201 = vpop.permute.xlu0 %200
    %v202 = vperm.slane %v44, 7
    %v203 = vlaneseq
    %v204 = vshrl.u32 %v203, 7
    %v205 = vadd.s32 %v204, 16
    %206 = vset.pattern.permute.xlu0 %v205
    %207 = vperm.xlu0 %206, %v202
    %v208 = vpop.permute.xlu0 %207
    %v217 = vmul.f32 %v155, %v162
    %v218 = vmul.f32 %v155, %v168
    %v219 = vmul.f32 %v155, %v174
    %v220 = vmul.f32 %v155, %v180
    %v221 = vmul.f32 %v155, %v187
    %v222 = vmul.f32 %v155, %v194
    %v223 = vmul.f32 %v155, %v201
    %v224 = vmul.f32 %v155, %v208
    %v225 = vmul.f32 %v156, %v162
    %v226 = vmul.f32 %v156, %v168
    %v227 = vmul.f32 %v156, %v174
    %v228 = vmul.f32 %v156, %v180
    %v229 = vmul.f32 %v156, %v187
    %v230 = vmul.f32 %v156, %v194
    %v231 = vmul.f32 %v156, %v201
    %v232 = vmul.f32 %v156, %v208
    %249 = vset.pattern.permute.xlu0 0
    %250 = vperm.xlu0 %249, %v217
    %v251 = vpop.permute.xlu0 %250
    %252 = vset.pattern.permute.xlu0 0
    %253 = vperm.xlu0 %252, %v218
    %v254 = vpop.permute.xlu0 %253
    %255 = vset.pattern.permute.xlu0 0
    %256 = vperm.xlu0 %255, %v219
    %v257 = vpop.permute.xlu0 %256
    %258 = vset.pattern.permute.xlu0 0
    %259 = vperm.xlu0 %258, %v220
    %v260 = vpop.permute.xlu0 %259
    %261 = vset.pattern.permute.xlu0 0
    %262 = vperm.xlu0 %261, %v221
    %v263 = vpop.permute.xlu0 %262
    %264 = vset.pattern.permute.xlu0 0
    %265 = vperm.xlu0 %264, %v222
    %v266 = vpop.permute.xlu0 %265
    %267 = vset.pattern.permute.xlu0 0
    %268 = vperm.xlu0 %267, %v223
    %v269 = vpop.permute.xlu0 %268
    %270 = vset.pattern.permute.xlu0 0
    %271 = vperm.xlu0 %270, %v224
    %v272 = vpop.permute.xlu0 %271
    %273 = vset.pattern.permute.xlu0 0
    %274 = vperm.xlu0 %273, %v225
    %v275 = vpop.permute.xlu0 %274
    %276 = vset.pattern.permute.xlu0 0
    %277 = vperm.xlu0 %276, %v226
    %v278 = vpop.permute.xlu0 %277
    %279 = vset.pattern.permute.xlu0 0
    %280 = vperm.xlu0 %279, %v227
    %v281 = vpop.permute.xlu0 %280
    %282 = vset.pattern.permute.xlu0 0
    %283 = vperm.xlu0 %282, %v228
    %v284 = vpop.permute.xlu0 %283
    %285 = vset.pattern.permute.xlu0 0
    %286 = vperm.xlu0 %285, %v229
    %v287 = vpop.permute.xlu0 %286
    %288 = vset.pattern.permute.xlu0 0
    %289 = vperm.xlu0 %288, %v230
    %v290 = vpop.permute.xlu0 %289
    %291 = vset.pattern.permute.xlu0 0
    %292 = vperm.xlu0 %291, %v231
    %v293 = vpop.permute.xlu0 %292
    %294 = vset.pattern.permute.xlu0 0
    %295 = vperm.xlu0 %294, %v232
    %v296 = vpop.permute.xlu0 %295
    %v297 = vperm.slane %v251, %v128
    %v298 = vperm.slane %v254, %v128
    %v299 = vperm.slane %v257, %v128
    %v300 = vperm.slane %v260, %v128
    %v301 = vperm.slane %v263, %v128
    %v302 = vperm.slane %v266, %v128
    %v303 = vperm.slane %v269, %v128
    %v304 = vperm.slane %v272, %v128
    %v305 = vperm.slane %v275, %v128
    %v306 = vperm.slane %v278, %v128
    %v307 = vperm.slane %v281, %v128
    %v308 = vperm.slane %v284, %v128
    %v309 = vperm.slane %v287, %v128
    %v310 = vperm.slane %v290, %v128
    %v311 = vperm.slane %v293, %v128
    %v312 = vperm.slane %v296, %v128
    %v313 = vsel %vm137, %v298, %v297
    %v314 = vsel %vm139, %v299, %v313
    %v315 = vsel %vm141, %v300, %v314
    %vm316 = vcmask 1044484
    %v317 = vsel %vm316, %v301, %v315
    %vm318 = vcmask 1045509
    %v319 = vsel %vm318, %v302, %v317
    %vm320 = vcmask 1046534
    %v321 = vsel %vm320, %v303, %v319
    %vm322 = vcmask 1047559
    %v323 = vsel %vm322, %v304, %v321
    %v324 = vsel %vm137, %v306, %v305
    %v325 = vsel %vm139, %v307, %v324
    %v326 = vsel %vm141, %v308, %v325
    %v327 = vsel %vm316, %v309, %v326
    %v328 = vsel %vm318, %v310, %v327
    %v329 = vsel %vm320, %v311, %v328
    %v330 = vsel %vm322, %v312, %v329
    %vm333 = vcmask 31744
    %v334 = vsel %vm333, %v323, 0.0
    %335 = vadd.xlane.f32.xlu0 %v334
    %v336 = vpop.xlane.xlu0 %335
    %v337 = vsel %vm333, %v330, 0.0
    %338 = vadd.xlane.f32.xlu0 %v337
    %v339 = vpop.xlane.xlu0 %338
    %v340 = vxor.u32 %v336, 2147483648
    %v341 = vxor.u32 %v339, 2147483648
    %v342 = vmul.f32 %v340, 1.442695
    %v343 = vpow.pop %v342
    %v344 = vmul.f32 %v341, 1.442695
    %v345 = vpow.pop %v344
    %v346 = vadd.f32 %v343, 1.0
    %v347 = vadd.f32 %v345, 1.0
    %v348 = vrcp.pop %v346
    %v349 = vmul.f32 %v346, %v348
    %v350 = vsub.f32 1.0, %v349
    %v351 = vmul.f32 %v348, %v350
    %v352 = vadd.f32 %v348, %v351
    %vm353 = vweird.f32 %v346
    %vm354 = vweird.f32 %v348
    %vm355 = vmor %vm353, %vm354
    %v356 = vsel %vm355, %v348, %v352
    %v357 = vand.u32 2147483647, %v346
    %vm358 = vcmp.eq.f32.partialorder %v357, 8.507059e+37
    %v359 = vand.u32 %v346, 2147483648
    %v360 = vor.u32 1.1754944e-38, %v359
    %v361 = vsel %vm358, %v360, %v356
    %v362 = vmul.f32 1.0, %v361
    %v363 = vrcp.pop %v347
    %v364 = vmul.f32 %v347, %v363
    %v365 = vsub.f32 1.0, %v364
    %v366 = vmul.f32 %v363, %v365
    %v367 = vadd.f32 %v363, %v366
    %vm368 = vweird.f32 %v347
    %vm369 = vweird.f32 %v363
    %vm370 = vmor %vm368, %vm369
    %v371 = vsel %vm370, %v363, %v367
    %v372 = vand.u32 2147483647, %v347
    %vm373 = vcmp.eq.f32.partialorder %v372, 8.507059e+37
    %v374 = vand.u32 %v347, 2147483648
    %v375 = vor.u32 1.1754944e-38, %v374
    %v376 = vsel %vm373, %v375, %v371
    %v377 = vmul.f32 1.0, %v376
    %378 = vrot.lane.b32.xlu0 %v44, 124
    %v379 = vpop.permute.xlu0 %378
    %381 = vrot.lane.b32.xlu0 %v42, 127
    %v382 = vpop.permute.xlu0 %381
    %v383 = vsel %vm333, %v379, 0
    %vm385 = vcmask 1043456
    %v386 = vsel %vm385, %v382, 0
    %388 = vmatpush.msra.mxu0 0.0
    %389 = vmatpush.msra.mxu0 0.0
    %390 = vmatpush.msra.mxu0 0.0
    %391 = vmatpush.msra.mxu0 0.0
    %392 = vmatpush.msra.mxu0 0.0
    %393 = vmatpush.msra.mxu0 0.0
    %394 = vmatpush.msra.mxu0 0.0
    %395 = vmatpush.msra.mxu0 0.0
    %396 = vmatpush.msra.mxu0 0.0
    %397 = vmatpush.msra.mxu0 0.0
    %398 = vmatpush.msra.mxu0 0.0
    %399 = vmatpush.msra.mxu0 0.0
    %400 = vmatpush.msra.mxu0 0.0
    %401 = vmatpush.msra.mxu0 0.0
    %402 = vmatpush.msra.mxu0 0.0
    %403 = vmatpush.msra.mxu0 %v386
    %404 = vmatmul.f32.gmra.mxu0 %v383
    %v405 = vpop.f32.mrf.mxu0
    %v406 = vadd.f32 0.0, %v405
    %407 = vdwg.mxu0
    %409 = vrot.lane.b32.xlu0 %v43, 127
    %v410 = vpop.permute.xlu0 %409
    %v411 = vsel %vm385, %v410, 0
    %413 = vmatpush.msra.mxu0 0.0
    %414 = vmatpush.msra.mxu0 0.0
    %415 = vmatpush.msra.mxu0 0.0
    %416 = vmatpush.msra.mxu0 0.0
    %417 = vmatpush.msra.mxu0 0.0
    %418 = vmatpush.msra.mxu0 0.0
    %419 = vmatpush.msra.mxu0 0.0
    %420 = vmatpush.msra.mxu0 0.0
    %421 = vmatpush.msra.mxu0 0.0
    %422 = vmatpush.msra.mxu0 0.0
    %423 = vmatpush.msra.mxu0 0.0
    %424 = vmatpush.msra.mxu0 0.0
    %425 = vmatpush.msra.mxu0 0.0
    %426 = vmatpush.msra.mxu0 0.0
    %427 = vmatpush.msra.mxu0 0.0
    %428 = vmatpush.msra.mxu0 %v411
    %429 = vmatmul.f32.gmra.mxu0 %v383
    %v430 = vpop.f32.mrf.mxu0
    %v431 = vadd.f32 0.0, %v430
    %432 = vdwg.mxu0
    %v433 = vsel %vm333, %v44, 0
    %v435 = vsel %vm385, %v42, 0
    %437 = vmatpush.msra.mxu0 0.0
    %438 = vmatpush.msra.mxu0 0.0
    %439 = vmatpush.msra.mxu0 0.0
    %440 = vmatpush.msra.mxu0 0.0
    %441 = vmatpush.msra.mxu0 0.0
    %442 = vmatpush.msra.mxu0 0.0
    %443 = vmatpush.msra.mxu0 0.0
    %444 = vmatpush.msra.mxu0 0.0
    %445 = vmatpush.msra.mxu0 0.0
    %446 = vmatpush.msra.mxu0 0.0
    %447 = vmatpush.msra.mxu0 0.0
    %448 = vmatpush.msra.mxu0 0.0
    %449 = vmatpush.msra.mxu0 0.0
    %450 = vmatpush.msra.mxu0 0.0
    %451 = vmatpush.msra.mxu0 0.0
    %452 = vmatpush.msra.mxu0 %v435
    %453 = vmatmul.f32.gmra.mxu0 %v433
    %v454 = vpop.f32.mrf.mxu0
    %v455 = vadd.f32 %v406, %v454
    %456 = vdwg.mxu0
    %v457 = vsel %vm385, %v43, 0
    %459 = vmatpush.msra.mxu0 0.0
    %460 = vmatpush.msra.mxu0 0.0
    %461 = vmatpush.msra.mxu0 0.0
    %462 = vmatpush.msra.mxu0 0.0
    %463 = vmatpush.msra.mxu0 0.0
    %464 = vmatpush.msra.mxu0 0.0
    %465 = vmatpush.msra.mxu0 0.0
    %466 = vmatpush.msra.mxu0 0.0
    %467 = vmatpush.msra.mxu0 0.0
    %468 = vmatpush.msra.mxu0 0.0
    %469 = vmatpush.msra.mxu0 0.0
    %470 = vmatpush.msra.mxu0 0.0
    %471 = vmatpush.msra.mxu0 0.0
    %472 = vmatpush.msra.mxu0 0.0
    %473 = vmatpush.msra.mxu0 0.0
    %474 = vmatpush.msra.mxu0 %v457
    %475 = vmatmul.f32.gmra.mxu0 %v433
    %v476 = vpop.f32.mrf.mxu0
    %v477 = vadd.f32 %v431, %v476
    %478 = vdwg.mxu0
    %479 = vrot.lane.b32.xlu0 %v44, 120
    %v480 = vpop.permute.xlu0 %479
    %481 = vrot.lane.b32.xlu0 %v42, 126
    %v482 = vpop.permute.xlu0 %481
    %v483 = vsel %vm333, %v480, 0
    %v485 = vsel %vm385, %v482, 0
    %487 = vmatpush.msra.mxu0 0.0
    %488 = vmatpush.msra.mxu0 0.0
    %489 = vmatpush.msra.mxu0 0.0
    %490 = vmatpush.msra.mxu0 0.0
    %491 = vmatpush.msra.mxu0 0.0
    %492 = vmatpush.msra.mxu0 0.0
    %493 = vmatpush.msra.mxu0 0.0
    %494 = vmatpush.msra.mxu0 0.0
    %495 = vmatpush.msra.mxu0 0.0
    %496 = vmatpush.msra.mxu0 0.0
    %497 = vmatpush.msra.mxu0 0.0
    %498 = vmatpush.msra.mxu0 0.0
    %499 = vmatpush.msra.mxu0 0.0
    %500 = vmatpush.msra.mxu0 0.0
    %501 = vmatpush.msra.mxu0 0.0
    %502 = vmatpush.msra.mxu0 %v485
    %503 = vmatmul.f32.gmra.mxu0 %v483
    %v504 = vpop.f32.mrf.mxu0
    %v505 = vadd.f32 0.0, %v504
    %506 = vdwg.mxu0
    %507 = vrot.lane.b32.xlu0 %v43, 126
    %v508 = vpop.permute.xlu0 %507
    %v509 = vsel %vm385, %v508, 0
    %511 = vmatpush.msra.mxu0 0.0
    %512 = vmatpush.msra.mxu0 0.0
    %513 = vmatpush.msra.mxu0 0.0
    %514 = vmatpush.msra.mxu0 0.0
    %515 = vmatpush.msra.mxu0 0.0
    %516 = vmatpush.msra.mxu0 0.0
    %517 = vmatpush.msra.mxu0 0.0
    %518 = vmatpush.msra.mxu0 0.0
    %519 = vmatpush.msra.mxu0 0.0
    %520 = vmatpush.msra.mxu0 0.0
    %521 = vmatpush.msra.mxu0 0.0
    %522 = vmatpush.msra.mxu0 0.0
    %523 = vmatpush.msra.mxu0 0.0
    %524 = vmatpush.msra.mxu0 0.0
    %525 = vmatpush.msra.mxu0 0.0
    %526 = vmatpush.msra.mxu0 %v509
    %527 = vmatmul.f32.gmra.mxu0 %v483
    %v528 = vpop.f32.mrf.mxu0
    %v529 = vadd.f32 0.0, %v528
    %530 = vdwg.mxu0
    %v531 = vadd.f32 %v455, %v505
    %v532 = vadd.f32 %v477, %v529
    %vm533 = vcmask 130048
    %v534 = vsel %vm533, %v531, 0.0
    %535 = vadd.xlane.f32.xlu0 %v534
    %v536 = vpop.xlane.xlu0 %535
    %v537 = vsel %vm533, %v532, 0.0
    %538 = vadd.xlane.f32.xlu0 %v537
    %v539 = vpop.xlane.xlu0 %538
    %v540 = vadd.f32 %v536, %v539
    %v541 = vmul.f32 %v540, 0.03125
    %v542 = vsub.f32 %v531, %v541
    %v543 = vsub.f32 %v532, %v541
    %v544 = vmul.f32 %v542, %v542
    %v545 = vmul.f32 %v543, %v543
    %v546 = vsel %vm533, %v544, 0.0
    %547 = vadd.xlane.f32.xlu0 %v546
    %v548 = vpop.xlane.xlu0 %547
    %v549 = vsel %vm533, %v545, 0.0
    %550 = vadd.xlane.f32.xlu0 %v549
    %v551 = vpop.xlane.xlu0 %550
    %v552 = vadd.f32 %v548, %v551
    %v553 = vmul.f32 %v552, 0.03125
    %v554 = vadd.f32 %v553, 1e-05
    %v555 = vrsqrt.pop %v554
    %v556 = vmul.f32 %v555, %v554
    %v557 = vmul.f32 %v556, %v555
    %v558 = vmul.f32 0.5, %v557
    %v559 = vsub.f32 1.5, %v558
    %v560 = vmul.f32 %v555, %v559
    %vm561 = vweird.f32 %v554
    %vm562 = vweird.f32 %v555
    %vm563 = vmor %vm561, %vm562
    %v564 = vsel %vm563, %v555, %v560
    %v565 = vmul.f32 %v44, %v564
    %567 = vset.pattern.permute.xlu0 20
    %568 = vperm.xlu0 %567, %v565
    %v569 = vpop.permute.xlu0 %568
    %v571 = vmul.f32 %v542, %v569
    %v572 = vmul.f32 %v543, %v569
    %573 = vset.pattern.permute.xlu0 21
    %574 = vperm.xlu0 %573, %v44
    %v575 = vpop.permute.xlu0 %574
    %v577 = vadd.f32 %v571, %v575
    %v578 = vadd.f32 %v572, %v575
    %v579 = vmax.f32 %v577, 0.0
    %v580 = vmax.f32 %v578, 0.0
    %v581 = vmul.f32 %v579, %v362
    %v582 = vmul.f32 %v580, %v377
    %583 = vst.msk [vmem:[#allocation7] sm:$0xff] %vm533, %v581
    %584 = vst.msk [vmem:[#allocation7 + $0x8] sm:$0xff] %vm533, %v582
    // Predicated region
    $region18: #{tpu_custom_call.1} parent=1 // pred_check
      _
    $region19: #{tpu_custom_call.1} parent=1 // pred_check_branch
      %586 = sbr.rel (0) target = $region21
    $region20: #{tpu_custom_call.1} parent=1 // pred_region
      %588 = vsyncadd [#allocation4], 0
      %s589 = sshll.u32 [#allocation7], 4
      %s590 = int_to_ptr.vmem [resolvable:$true] %s589
      %s591 = sshll.u32 %s2, 4
      %s592 = int_to_ptr.hbm [resolvable:$true] %s591
      %597 = dma.vmem_to_hbm [thread:$0]  %s590, 256, %s592, [#allocation4], 128, 128, 8
    $region21: #{tpu_custom_call.1} parent=1 // pred_fallthru
      _
    // Predicated region
    $region22: #{tpu_custom_call.1} parent=1 // pred_check
      _
    $region23: #{tpu_custom_call.1} parent=1 // pred_check_branch
      %599 = sbr.rel (0) target = $region25
    $region24: #{tpu_custom_call.1} parent=1 // pred_region
      %601 = dma.done [#allocation4], 256
    $region25: #{tpu_custom_call.1} parent=1 // pred_fallthru
      _
    %602 = vsyncpa [#allocation3], 1
    %603 = vsyncpa [#allocation6], 1
    %604 = vsyncpa [#allocation4], 1

</llo_original>
